<compile_context>
chip_gen: v5e
topology: v5e:2x2
jax: 0.10.0
libtpu: 0.0.40
codegen_flags: <defaults>
</compile_context>

<pallas_src>
from functools import partial

import jax
import jax.numpy as jnp
import numpy as np
from jax import lax
from jax.experimental import pallas as pl
from jax.experimental.pallas import tpu as pltpu

HIDDEN = 32        # config.hidden_size
EMBED = 32         # config.embedding_size (defaults to hidden_size)
VOCAB = 128        # config.vocab_size (lane-dense for the example)
LN_EPS = 1e-7      # config.layer_norm_eps (DeBERTa/ProSST default)

_INV_SQRT2 = 0.7071067811865476


def _round_up(x, m):
    return ((x + m - 1) // m) * m


def _transform(x, wd, bd, gamma, beta, eps):
    """dense -> exact (erf) GELU -> LayerNorm, all in f32 (matches torch)."""
    h = jnp.dot(x, wd, preferred_element_type=jnp.float32) + bd
    h = 0.5 * h * (1.0 + lax.erf(h * _INV_SQRT2))
    mu = jnp.mean(h, axis=-1, keepdims=True)
    var = jnp.mean(jnp.square(h - mu), axis=-1, keepdims=True)
    h = (h - mu) * lax.rsqrt(var + eps)
    return h * gamma + beta


def _mlm_head_kernel_fused(x_ref, wd_ref, bd_ref, g_ref, b_ref, wdec_ref,
                           out_ref, *, eps):
    """Single vocab tile (decoder weight fully resident): grid = (row tiles,).

    Transform + decode fused, no scratch round-trip, one lane-dense store.
    """
    h = _transform(x_ref[...], wd_ref[...], bd_ref[...], g_ref[...],
                   b_ref[...], eps)
    out_ref[...] = jnp.dot(h.astype(wdec_ref.dtype), wdec_ref[...],
                           preferred_element_type=jnp.float32
                           ).astype(out_ref.dtype)


def _mlm_head_kernel_tiled(x_ref, wd_ref, bd_ref, g_ref, b_ref, wdec_ref,
                           out_ref, h_ref, *, eps):
    """Grid = (row tiles, vocab tiles). Transform cached per row tile.

    INVARIANT: the vocab axis (grid dim 1) must remain innermost and
    "arbitrary"; h_ref is written only at program_id(1)==0 and reused across
    the whole vocab sweep for the same row tile. Do NOT mark it "parallel" or
    reorder the grid.
    """
    @pl.when(pl.program_id(1) == 0)
    def _():
        h = _transform(x_ref[...], wd_ref[...], bd_ref[...], g_ref[...],
                       b_ref[...], eps)
        h_ref[...] = h.astype(h_ref.dtype)            # bf16 cache, [TM, E]

    # Decoder: lane-dense [TM, TV] bf16 matmul (f32 accumulate) + single store.
    out_ref[...] = jnp.dot(h_ref[...], wdec_ref[...],
                           preferred_element_type=jnp.float32
                           ).astype(out_ref.dtype)


def prosst_mlm_head(sequence_output, params, *, eps=LN_EPS,
                    out_dtype=jnp.bfloat16, row_tile=None, vocab_tile=None):
    B, L, D = sequence_output.shape
    E = params["wd"].shape[1]
    V = params["wdec"].shape[1]
    N = B * L
    x = sequence_output.reshape(N, D).astype(jnp.float32)

    wd = params["wd"].astype(jnp.float32)
    bd = params["bd"].reshape(1, E).astype(jnp.float32)
    gamma = params["gamma"].reshape(1, E).astype(jnp.float32)
    beta = params["beta"].reshape(1, E).astype(jnp.float32)
    # bf16 decoder weight: halves HBM/VMEM traffic, bf16 MXU rate.
    wdec = params["wdec"].astype(jnp.bfloat16)

    # --- Row tile: multiple of 8, capped at 512, at least two tiles when
    #     possible so both v7x TensorCores get work ("parallel" row axis).
    if row_tile is not None:
        TM = row_tile
    elif N <= 8:
        TM = _round_up(max(N, 1), 8)
    else:
        TM = min(512, _round_up(pl.cdiv(N, 2), 8))
    N_pad = _round_up(N, TM)
    if N_pad != N:
        x = jnp.pad(x, ((0, N_pad - N), (0, 0)))

    # --- Vocab tile: lane-dense multiple of 128. Keep the whole bf16 decoder
    #     weight resident in VMEM when small (constant index_map => DMA'd
    #     once); otherwise stream it in 2048-column tiles.
    if vocab_tile is not None:
        TV = vocab_tile
    elif E * _round_up(V, 128) * 2 <= 8 * 1024 * 1024:
        TV = _round_up(V, 128)
    else:
        TV = 2048
    V_pad = _round_up(V, TV)
    if V_pad != V:
        wdec = jnp.pad(wdec, ((0, 0), (0, V_pad - V)))

    n_row_tiles = N_pad // TM
    n_voc_tiles = V_pad // TV
    out_bytes = jnp.dtype(out_dtype).itemsize

    # Explicit VMEM budget: double-buffered x/out/wdec tiles + resident params
    # + bf16 h scratch, with headroom. Fits v7x's 64 MiB at realistic shapes;
    # avoids v5e's ~16 MiB scoped default being the limiter.
    vmem_est = 2 * (TM * D * 4 + TM * TV * out_bytes + D * E * 4
                    + 3 * E * 4 + E * TV * 2) + TM * E * 2
    vmem_limit = max(16 * 1024 * 1024,
                     min(int(1.5 * vmem_est) + (1 << 20), 64 * 1024 * 1024))

    if n_voc_tiles == 1:
        out = pl.pallas_call(
            partial(_mlm_head_kernel_fused, eps=eps),
            out_shape=jax.ShapeDtypeStruct((N_pad, V_pad), out_dtype),
            grid=(n_row_tiles,),
            in_specs=[
                pl.BlockSpec((TM, D), lambda i: (i, 0)),   # sequence rows
                pl.BlockSpec((D, E), lambda i: (0, 0)),    # dense weight
                pl.BlockSpec((1, E), lambda i: (0, 0)),    # dense bias
                pl.BlockSpec((1, E), lambda i: (0, 0)),    # LayerNorm gamma
                pl.BlockSpec((1, E), lambda i: (0, 0)),    # LayerNorm beta
                pl.BlockSpec((E, TV), lambda i: (0, 0)),   # decoder weight (resident)
            ],
            out_specs=pl.BlockSpec((TM, TV), lambda i: (i, 0)),
            compiler_params=pltpu.CompilerParams(
                dimension_semantics=("parallel",),
                vmem_limit_bytes=vmem_limit),
        )(x, wd, bd, gamma, beta, wdec)
    else:
        const2 = lambda i, j: (0, 0)
        out = pl.pallas_call(
            partial(_mlm_head_kernel_tiled, eps=eps),
            out_shape=jax.ShapeDtypeStruct((N_pad, V_pad), out_dtype),
            grid=(n_row_tiles, n_voc_tiles),
            in_specs=[
                pl.BlockSpec((TM, D), lambda i, j: (i, 0)),
                pl.BlockSpec((D, E), const2),
                pl.BlockSpec((1, E), const2),
                pl.BlockSpec((1, E), const2),
                pl.BlockSpec((1, E), const2),
                pl.BlockSpec((E, TV), lambda i, j: (0, j)),
            ],
            out_specs=pl.BlockSpec((TM, TV), lambda i, j: (i, j)),
            scratch_shapes=[pltpu.VMEM((TM, E), jnp.bfloat16)],
            compiler_params=pltpu.CompilerParams(
                dimension_semantics=("parallel", "arbitrary"),
                vmem_limit_bytes=vmem_limit),
        )(x, wd, bd, gamma, beta, wdec)

    # Drop padded rows / padded vocab columns before returning.
    return out[:N, :V].reshape(B, L, V)


def reference(sequence_output, params, *, eps=LN_EPS):
    """Pure-JAX f32 mirror of the PyTorch forward (eval mode)."""
    h = sequence_output @ params["wd"] + params["bd"].reshape(-1)
    h = 0.5 * h * (1.0 + lax.erf(h * _INV_SQRT2))
    mu = jnp.mean(h, axis=-1, keepdims=True)
    var = jnp.mean(jnp.square(h - mu), axis=-1, keepdims=True)
    h = (h - mu) / jnp.sqrt(var + eps)
    h = h * params["gamma"].reshape(-1) + params["beta"].reshape(-1)
    return h @ params["wdec"]


def init_params(key):
    ks = jax.random.split(key, 5)
    s = 0.05
    return {
        "wd": s * jax.random.normal(ks[0], (HIDDEN, EMBED), jnp.float32),
        "bd": s * jax.random.normal(ks[1], (1, EMBED), jnp.float32),
        "gamma": 1.0 + 0.1 * jax.random.normal(ks[2], (1, EMBED), jnp.float32),
        "beta": 0.1 * jax.random.normal(ks[3], (1, EMBED), jnp.float32),
        "wdec": s * jax.random.normal(ks[4], (EMBED, VOCAB), jnp.float32),
    }


if __name__ == "__main__":
    B, L = 2, 8
    key = jax.random.PRNGKey(0)
    k_x, k_p = jax.random.split(key, 2)

    sequence_output = jax.random.normal(k_x, (B, L, HIDDEN), jnp.float32)
    params = init_params(k_p)

    # Fused single-vocab-tile path (decoder weight fully resident).
    out = prosst_mlm_head(sequence_output, params)
    out = jax.block_until_ready(out)
    assert out.shape == (B, L, VOCAB) and out.dtype == jnp.bfloat16

    ref = reference(sequence_output, params)
    # bf16 logits -> relaxed tolerance vs the f32 reference.
    np.testing.assert_allclose(np.asarray(out, dtype=np.float32),
                               np.asarray(ref), rtol=3e-2, atol=3e-2)

    # Also exercise the multi-vocab-tile (scratch-cached) path.
    params_big = dict(params)
    params_big["wdec"] = jnp.concatenate([params["wdec"], -params["wdec"]],
                                         axis=1)          # vocab = 256
    out2 = prosst_mlm_head(sequence_output, params_big, vocab_tile=128)
    out2 = jax.block_until_ready(out2)
    ref2 = reference(sequence_output, params_big)
    np.testing.assert_allclose(np.asarray(out2, dtype=np.float32),
                               np.asarray(ref2), rtol=3e-2, atol=3e-2)

    print("KERNEL_OK")
</pallas_src>

<mosaic_0001>
module attributes {stable_mosaic.version = 11 : i64} {
  func.func @_mlm_head_kernel_fused(%arg0: i32, %arg1: memref<8x32xf32, #tpu.memory_space<vmem>>, %arg2: memref<32x32xf32, #tpu.memory_space<vmem>>, %arg3: memref<1x32xf32, #tpu.memory_space<vmem>>, %arg4: memref<1x32xf32, #tpu.memory_space<vmem>>, %arg5: memref<1x32xf32, #tpu.memory_space<vmem>>, %arg6: memref<32x128xbf16, #tpu.memory_space<vmem>>, %arg7: memref<8x128xbf16, #tpu.memory_space<vmem>>) attributes {dimension_semantics = [#tpu.dimension_semantics<parallel>], iteration_bounds = array<i64: 2>, scalar_prefetch = 0 : i64, scratch_operands = 0 : i64, tpu.core_type = #tpu.core_type<tc>, window_params = [{transform_indices = @transform_0, window_bounds = array<i64: 8, 32>}, {pipeline_mode = #tpu.pipeline_mode<synchronous>, transform_indices = @transform_1, window_bounds = array<i64: 32, 32>}, {pipeline_mode = #tpu.pipeline_mode<synchronous>, transform_indices = @transform_2, window_bounds = array<i64: 1, 32>}, {pipeline_mode = #tpu.pipeline_mode<synchronous>, transform_indices = @transform_3, window_bounds = array<i64: 1, 32>}, {pipeline_mode = #tpu.pipeline_mode<synchronous>, transform_indices = @transform_4, window_bounds = array<i64: 1, 32>}, {pipeline_mode = #tpu.pipeline_mode<synchronous>, transform_indices = @transform_5, window_bounds = array<i64: 32, 128>}, {transform_indices = @transform_6, window_bounds = array<i64: 8, 128>}]} {
    %c0 = arith.constant 0 : index
    %c0_0 = arith.constant 0 : index
    %0 = vector.load %arg1[%c0, %c0_0] : memref<8x32xf32, #tpu.memory_space<vmem>>, vector<8x32xf32>
    %c0_1 = arith.constant 0 : index
    %c0_2 = arith.constant 0 : index
    %1 = vector.load %arg2[%c0_1, %c0_2] : memref<32x32xf32, #tpu.memory_space<vmem>>, vector<32x32xf32>
    %c0_3 = arith.constant 0 : index
    %c0_4 = arith.constant 0 : index
    %2 = vector.load %arg3[%c0_3, %c0_4] : memref<1x32xf32, #tpu.memory_space<vmem>>, vector<1x32xf32>
    %c0_5 = arith.constant 0 : index
    %c0_6 = arith.constant 0 : index
    %3 = vector.load %arg4[%c0_5, %c0_6] : memref<1x32xf32, #tpu.memory_space<vmem>>, vector<1x32xf32>
    %c0_7 = arith.constant 0 : index
    %c0_8 = arith.constant 0 : index
    %4 = vector.load %arg5[%c0_7, %c0_8] : memref<1x32xf32, #tpu.memory_space<vmem>>, vector<1x32xf32>
    %cst = arith.constant dense<0.000000e+00> : vector<8x32xf32>
    %5 = tpu.matmul %0, %1, %cst {dimension_numbers = #tpu.dot_dimension_numbers<[1], [0], [0], [1], [0, 0, 1, 1], [], []>} : vector<8x32xf32>, vector<32x32xf32>, vector<8x32xf32> -> vector<8x32xf32>
    %6 = vector.broadcast %2 : vector<1x32xf32> to vector<8x32xf32>
    %7 = arith.addf %5, %6 : vector<8x32xf32>
    %cst_9 = arith.constant 5.000000e-01 : f32
    %8 = vector.broadcast %cst_9 : f32 to vector<8x32xf32>
    %9 = arith.mulf %8, %7 : vector<8x32xf32>
    %cst_10 = arith.constant 0.707106769 : f32
    %10 = vector.broadcast %cst_10 : f32 to vector<8x32xf32>
    %11 = arith.mulf %7, %10 : vector<8x32xf32>
    %12 = math.erf %11 : vector<8x32xf32>
    %cst_11 = arith.constant 1.000000e+00 : f32
    %13 = vector.broadcast %cst_11 : f32 to vector<8x32xf32>
    %14 = arith.addf %13, %12 : vector<8x32xf32>
    %15 = arith.mulf %9, %14 : vector<8x32xf32>
    %cst_12 = arith.constant dense<0.000000e+00> : vector<8xf32>
    %16 = vector.multi_reduction <add>, %15, %cst_12 [1] : vector<8x32xf32> to vector<8xf32>
    %17 = vector.shape_cast %16 : vector<8xf32> to vector<8x1xf32>
    %cst_13 = arith.constant 3.200000e+01 : f32
    %18 = vector.broadcast %cst_13 : f32 to vector<8x1xf32>
    %19 = arith.divf %17, %18 : vector<8x1xf32>
    %20 = vector.broadcast %19 : vector<8x1xf32> to vector<8x32xf32>
    %21 = arith.subf %15, %20 : vector<8x32xf32>
    %22 = arith.mulf %21, %21 : vector<8x32xf32>
    %cst_14 = arith.constant dense<0.000000e+00> : vector<8xf32>
    %23 = vector.multi_reduction <add>, %22, %cst_14 [1] : vector<8x32xf32> to vector<8xf32>
    %24 = vector.shape_cast %23 : vector<8xf32> to vector<8x1xf32>
    %cst_15 = arith.constant 3.200000e+01 : f32
    %25 = vector.broadcast %cst_15 : f32 to vector<8x1xf32>
    %26 = arith.divf %24, %25 : vector<8x1xf32>
    %27 = vector.broadcast %19 : vector<8x1xf32> to vector<8x32xf32>
    %28 = arith.subf %15, %27 : vector<8x32xf32>
    %cst_16 = arith.constant 1.000000e-07 : f32
    %29 = vector.broadcast %cst_16 : f32 to vector<8x1xf32>
    %30 = arith.addf %26, %29 : vector<8x1xf32>
    %31 = math.rsqrt %30 : vector<8x1xf32>
    %32 = vector.broadcast %31 : vector<8x1xf32> to vector<8x32xf32>
    %33 = arith.mulf %28, %32 : vector<8x32xf32>
    %34 = vector.broadcast %3 : vector<1x32xf32> to vector<8x32xf32>
    %35 = arith.mulf %33, %34 : vector<8x32xf32>
    %36 = vector.broadcast %4 : vector<1x32xf32> to vector<8x32xf32>
    %37 = arith.addf %35, %36 : vector<8x32xf32>
    %38 = arith.truncf %37 : vector<8x32xf32> to vector<8x32xbf16>
    %c0_17 = arith.constant 0 : index
    %c0_18 = arith.constant 0 : index
    %39 = vector.load %arg6[%c0_17, %c0_18] : memref<32x128xbf16, #tpu.memory_space<vmem>>, vector<32x128xbf16>
    %cst_19 = arith.constant dense<0.000000e+00> : vector<8x128xf32>
    %40 = tpu.matmul %38, %39, %cst_19 {dimension_numbers = #tpu.dot_dimension_numbers<[1], [0], [0], [1], [0, 0, 1, 1], [], []>} : vector<8x32xbf16>, vector<32x128xbf16>, vector<8x128xf32> -> vector<8x128xf32>
    %41 = arith.truncf %40 : vector<8x128xf32> to vector<8x128xbf16>
    %c0_20 = arith.constant 0 : index
    %c0_21 = arith.constant 0 : index
    %42 = vector.load %arg7[%c0_20, %c0_21] : memref<8x128xbf16, #tpu.memory_space<vmem>>, vector<8x128xbf16>
    tpu.vector_store %arg7[%c0_20, %c0_21], %41 {strides = array<i32>} : memref<8x128xbf16, #tpu.memory_space<vmem>>, vector<8x128xbf16>,
    return
  }
  func.func @transform_0(%arg0: i32) -> (i32, i32) {
    %c0_i32 = arith.constant 0 : i32
    %c0_i32_0 = arith.constant 0 : i32
    return %arg0, %c0_i32 : i32, i32
  }
  func.func @transform_1(%arg0: i32) -> (i32, i32) {
    %c0_i32 = arith.constant 0 : i32
    %c0_i32_0 = arith.constant 0 : i32
    %c0_i32_1 = arith.constant 0 : i32
    return %c0_i32, %c0_i32_0 : i32, i32
  }
  func.func @transform_2(%arg0: i32) -> (i32, i32) {
    %c0_i32 = arith.constant 0 : i32
    %c0_i32_0 = arith.constant 0 : i32
    %c0_i32_1 = arith.constant 0 : i32
    return %c0_i32, %c0_i32_0 : i32, i32
  }
  func.func @transform_3(%arg0: i32) -> (i32, i32) {
    %c0_i32 = arith.constant 0 : i32
    %c0_i32_0 = arith.constant 0 : i32
    %c0_i32_1 = arith.constant 0 : i32
    return %c0_i32, %c0_i32_0 : i32, i32
  }
  func.func @transform_4(%arg0: i32) -> (i32, i32) {
    %c0_i32 = arith.constant 0 : i32
    %c0_i32_0 = arith.constant 0 : i32
    %c0_i32_1 = arith.constant 0 : i32
    return %c0_i32, %c0_i32_0 : i32, i32
  }
  func.func @transform_5(%arg0: i32) -> (i32, i32) {
    %c0_i32 = arith.constant 0 : i32
    %c0_i32_0 = arith.constant 0 : i32
    %c0_i32_1 = arith.constant 0 : i32
    return %c0_i32, %c0_i32_0 : i32, i32
  }
  func.func @transform_6(%arg0: i32) -> (i32, i32) {
    %c0_i32 = arith.constant 0 : i32
    %c0_i32_0 = arith.constant 0 : i32
    return %arg0, %c0_i32 : i32, i32
  }
}

</mosaic_0001>

<llo_original>
// kernel: tpu_custom_call.1
$region0: #{tpu_custom_call.1}
  #allocation0 [shape = 'u32[]', space=smem, size = 0x4, offset = 0x4, fixed_abs, tag = 'smem constant byte address 0x4 - core index']
  #allocation1 [shape = 'u32[72,128]{1,0:T(1,128)}', space=vmem, size = 0x9000, scoped, tag = 'internal scratch']
  %s0 = inlined_call_operand.hbm [shape: f32[16,32], index: 0, kind: input, shape index: {}]
  %s1 = inlined_call_operand.hbm [shape: f32[32,32], index: 1, kind: input, shape index: {}]
  %s2 = inlined_call_operand.vmem [shape: f32[1,32], index: 2, kind: input, shape index: {}]
  %s3 = inlined_call_operand.vmem [shape: f32[1,32], index: 3, kind: input, shape index: {}]
  %s4 = inlined_call_operand.vmem [shape: f32[1,32], index: 4, kind: input, shape index: {}]
  %s5 = inlined_call_operand.hbm [shape: bf16[32,128], index: 5, kind: input, shape index: {}]
  %s6 = inlined_call_operand.hbm [shape: bf16[16,128], index: 6, kind: output, shape index: {}]
  %s7 = sld [smem:[#allocation0]]
  $region69: #{tpu_custom_call.1} parent=0
    _
  %s9 = ssub.s32 1, %s7
  %s10 = scalar_select 0, %s9, %s7
  $region1: #{tpu_custom_call.1} parent=0
    #allocation2 [shape = 'u8[8192]{0}', space=vmem, size = 0x2000, scoped, tag = 'input window, operand 0']
    #allocation3 [shape = 's32[2]{0}', space=sflag, size = 0x8, scoped, tag = 'scoped memory for tpu_custom_call.1']
    #allocation4 [shape = 's32[2]{0}', space=sflag, size = 0x8, scoped, tag = 'scoped memory for tpu_custom_call.1']
    #allocation5 [shape = 'u8[16384]{0}', space=vmem, size = 0x4000, scoped, tag = 'input window, operand 1, single buffered']
    #allocation6 [shape = 's32[1]{0}', space=sflag, size = 0x4, scoped, tag = 'scoped memory for tpu_custom_call.1']
    #allocation7 [shape = 'u8[8192]{0}', space=vmem, size = 0x2000, scoped, tag = 'input window, operand 5, single buffered']
    #allocation8 [shape = 'u8[4096]{0}', space=vmem, size = 0x1000, scoped, tag = 'output window, operand 0']
    %11 = vsyncpa [#allocation3], 0
    %s12 = scalar_lea.sflag [#allocation3], 1
    %13 = vsyncpa %s12, 0
    %14 = vsyncpa [#allocation6], 0
    %15 = vsyncpa [#allocation4], 0
    %s16 = scalar_lea.sflag [#allocation4], 1
    %17 = vsyncpa %s16, 0
    loop: start=0, step=1, limit=4
    $region2: #{tpu_custom_call.1} parent=1 // loop_pre_header
      _
    $region3: #{tpu_custom_call.1} parent=1 // loop_header
      %s19 = sphi 0, %s23
      %p20 = scmp.ge.s32.totalorder %s19, 4
      %s29 = sphi 0, %s31
      %s32 = sphi 0, %s29
      %s33 = sphi 0, %s32
      %s49 = sphi 0, %s33
      %s53 = sphi 0, %s53
      %s55 = sphi 0, %s53
      %s56 = sphi 0, %s55
      %s70 = sphi 0, %s56
      %s74 = sphi 0, %s74
      %s76 = sphi 0, %s74
      %s77 = sphi 0, %s76
      %s91 = sphi 0, %s77
      %s95 = sphi 0, %s95
      %s97 = sphi 0, %s95
      %s98 = sphi 0, %s97
      %s112 = sphi 0, %s98
      %s116 = sphi 0, %s116
      %s118 = sphi 0, %s116
      %s119 = sphi 0, %s118
      %s133 = sphi 0, %s119
      %s137 = sphi 0, %s137
      %s139 = sphi 0, %s137
      %s140 = sphi 0, %s139
      %s154 = sphi 0, %s140
      %s160 = sphi 0, %s162
      %s163 = sphi 0, %s160
      %s164 = sphi 0, %s163
      %s180 = sphi 0, %s164
    $region4: #{tpu_custom_call.1} parent=1 // loop_header_branch
      %22 = sbr.rel (%p20) target = $region8
    $region5: #{tpu_custom_call.1} parent=1 // loop_body
      %s24 = ssub.s32 %s19, 1
      %s25 = ssub.s32 %s19, 2
      %s26 = sadd.s32 %s19, 1
      %s27 = ssub.s32 %s19, %s26
      %p28 = scmp.eq.s32.totalorder %s27, 0
      %s30 = sadd.s32 %s29, 1
      %s31 = scalar_select %p28, %s29, %s30
      %p34 = pneg %p28
      %p35 = scmp.eq.s32.totalorder %s19, 1
      %p36 = por %p34, %p35
      %p37 = scmp.ne.s32.totalorder %s29, %s32
      %p38 = scmp.eq.s32.totalorder %s19, 0
      %p39 = por %p37, %p38
      %p40 = scmp.ne.s32.totalorder %s29, %s32
      %p41 = scmp.eq.s32.totalorder %s24, 1
      %p42 = por %p40, %p41
      %p43 = scmp.ne.s32.totalorder %s32, %s33
      %p44 = scmp.eq.s32.totalorder %s24, 0
      %p45 = por %p43, %p44
      %p46 = scmp.ne.s32.totalorder %s32, %s33
      %p47 = scmp.eq.s32.totalorder %s25, 1
      %p48 = por %p46, %p47
      %p50 = scmp.ne.s32.totalorder %s33, %s49
      %p51 = scmp.eq.s32.totalorder %s25, 0
      %p52 = por %p50, %p51
      %s54 = sadd.s32 %s53, 1
      %p57 = scmp.eq.s32.totalorder %s19, 1
      %p58 = scmp.ne.s32.totalorder %s53, %s55
      %p59 = scmp.eq.s32.totalorder %s19, 0
      %p60 = por %p58, %p59
      %p61 = scmp.ne.s32.totalorder %s53, %s55
      %p62 = scmp.eq.s32.totalorder %s24, 1
      %p63 = por %p61, %p62
      %p64 = scmp.ne.s32.totalorder %s55, %s56
      %p65 = scmp.eq.s32.totalorder %s24, 0
      %p66 = por %p64, %p65
      %p67 = scmp.ne.s32.totalorder %s55, %s56
      %p68 = scmp.eq.s32.totalorder %s25, 1
      %p69 = por %p67, %p68
      %p71 = scmp.ne.s32.totalorder %s56, %s70
      %p72 = scmp.eq.s32.totalorder %s25, 0
      %p73 = por %p71, %p72
      %s75 = sadd.s32 %s74, 1
      %p78 = scmp.eq.s32.totalorder %s19, 1
      %p79 = scmp.ne.s32.totalorder %s74, %s76
      %p80 = scmp.eq.s32.totalorder %s19, 0
      %p81 = por %p79, %p80
      %p82 = scmp.ne.s32.totalorder %s74, %s76
      %p83 = scmp.eq.s32.totalorder %s24, 1
      %p84 = por %p82, %p83
      %p85 = scmp.ne.s32.totalorder %s76, %s77
      %p86 = scmp.eq.s32.totalorder %s24, 0
      %p87 = por %p85, %p86
      %p88 = scmp.ne.s32.totalorder %s76, %s77
      %p89 = scmp.eq.s32.totalorder %s25, 1
      %p90 = por %p88, %p89
      %p92 = scmp.ne.s32.totalorder %s77, %s91
      %p93 = scmp.eq.s32.totalorder %s25, 0
      %p94 = por %p92, %p93
      %s96 = sadd.s32 %s95, 1
      %p99 = scmp.eq.s32.totalorder %s19, 1
      %p100 = scmp.ne.s32.totalorder %s95, %s97
      %p101 = scmp.eq.s32.totalorder %s19, 0
      %p102 = por %p100, %p101
      %p103 = scmp.ne.s32.totalorder %s95, %s97
      %p104 = scmp.eq.s32.totalorder %s24, 1
      %p105 = por %p103, %p104
      %p106 = scmp.ne.s32.totalorder %s97, %s98
      %p107 = scmp.eq.s32.totalorder %s24, 0
      %p108 = por %p106, %p107
      %p109 = scmp.ne.s32.totalorder %s97, %s98
      %p110 = scmp.eq.s32.totalorder %s25, 1
      %p111 = por %p109, %p110
      %p113 = scmp.ne.s32.totalorder %s98, %s112
      %p114 = scmp.eq.s32.totalorder %s25, 0
      %p115 = por %p113, %p114
      %s117 = sadd.s32 %s116, 1
      %p120 = scmp.eq.s32.totalorder %s19, 1
      %p121 = scmp.ne.s32.totalorder %s116, %s118
      %p122 = scmp.eq.s32.totalorder %s19, 0
      %p123 = por %p121, %p122
      %p124 = scmp.ne.s32.totalorder %s116, %s118
      %p125 = scmp.eq.s32.totalorder %s24, 1
      %p126 = por %p124, %p125
      %p127 = scmp.ne.s32.totalorder %s118, %s119
      %p128 = scmp.eq.s32.totalorder %s24, 0
      %p129 = por %p127, %p128
      %p130 = scmp.ne.s32.totalorder %s118, %s119
      %p131 = scmp.eq.s32.totalorder %s25, 1
      %p132 = por %p130, %p131
      %p134 = scmp.ne.s32.totalorder %s119, %s133
      %p135 = scmp.eq.s32.totalorder %s25, 0
      %p136 = por %p134, %p135
      %s138 = sadd.s32 %s137, 1
      %p141 = scmp.eq.s32.totalorder %s19, 1
      %p142 = scmp.ne.s32.totalorder %s137, %s139
      %p143 = scmp.eq.s32.totalorder %s19, 0
      %p144 = por %p142, %p143
      %p145 = scmp.ne.s32.totalorder %s137, %s139
      %p146 = scmp.eq.s32.totalorder %s24, 1
      %p147 = por %p145, %p146
      %p148 = scmp.ne.s32.totalorder %s139, %s140
      %p149 = scmp.eq.s32.totalorder %s24, 0
      %p150 = por %p148, %p149
      %p151 = scmp.ne.s32.totalorder %s139, %s140
      %p152 = scmp.eq.s32.totalorder %s25, 1
      %p153 = por %p151, %p152
      %p155 = scmp.ne.s32.totalorder %s140, %s154
      %p156 = scmp.eq.s32.totalorder %s25, 0
      %p157 = por %p155, %p156
      %s158 = ssub.s32 %s19, %s26
      %p159 = scmp.eq.s32.totalorder %s158, 0
      %s161 = sadd.s32 %s160, 1
      %s162 = scalar_select %p159, %s160, %s161
      %p165 = pneg %p159
      %p166 = scmp.eq.s32.totalorder %s19, 1
      %p167 = por %p165, %p166
      %p168 = scmp.ne.s32.totalorder %s160, %s163
      %p169 = scmp.eq.s32.totalorder %s19, 0
      %p170 = por %p168, %p169
      %p171 = scmp.ne.s32.totalorder %s160, %s163
      %p172 = scmp.eq.s32.totalorder %s24, 1
      %p173 = por %p171, %p172
      %p174 = scmp.ne.s32.totalorder %s163, %s164
      %p175 = scmp.eq.s32.totalorder %s24, 0
      %p176 = por %p174, %p175
      %p177 = scmp.ne.s32.totalorder %s163, %s164
      %p178 = scmp.eq.s32.totalorder %s25, 1
      %p179 = por %p177, %p178
      %p181 = scmp.ne.s32.totalorder %s164, %s180
      %p182 = scmp.eq.s32.totalorder %s25, 0
      %p183 = por %p181, %p182
      %p184 = scmp.le.s32.totalorder 1, %s19
      %p185 = scmp.lt.s32.totalorder %s19, 3
      %p186 = pnand %p184, %p185
      %p187 = pneg %p186
      // Predicated region
      $region9: #{tpu_custom_call.1} parent=5 // pred_check
        _
      $region10: #{tpu_custom_call.1} parent=5 // pred_check_branch
        %189 = sbr.rel (%p186) target = $region12
      $region11: #{tpu_custom_call.1} parent=5 // pred_region
        %s190 = ssub.s32 %s19, 1
        // Predicated region
        $region13: #{tpu_custom_call.1} parent=11 // pred_check
          %p191 = pneg %p66
        $region14: #{tpu_custom_call.1} parent=11 // pred_check_branch
          %193 = sbr.rel (%p191) target = $region16
        $region15: #{tpu_custom_call.1} parent=11 // pred_region
          %195 = vsyncadd [#allocation6], 0
          %s196 = sshll.u32 %s1, 4
          %s197 = int_to_ptr.hbm [resolvable:$true] %s196
          %s198 = sshll.u32 [#allocation5], 4
          %s199 = int_to_ptr.vmem [resolvable:$true] %s198
          %204 = dma.hbm_to_vmem [thread:$0]  %s197, 512, %s199, [#allocation6], 128, 128, 8
        $region16: #{tpu_custom_call.1} parent=11 // pred_fallthru
          _
        // Predicated region
        $region17: #{tpu_custom_call.1} parent=11 // pred_check
          %p205 = pneg %p87
        $region18: #{tpu_custom_call.1} parent=11 // pred_check_branch
          %207 = sbr.rel (%p205) target = $region20
        $region19: #{tpu_custom_call.1} parent=11 // pred_region
          _
        $region20: #{tpu_custom_call.1} parent=11 // pred_fallthru
          _
        // Predicated region
        $region21: #{tpu_custom_call.1} parent=11 // pred_check
          %p208 = pneg %p108
        $region22: #{tpu_custom_call.1} parent=11 // pred_check_branch
          %210 = sbr.rel (%p208) target = $region24
        $region23: #{tpu_custom_call.1} parent=11 // pred_region
          _
        $region24: #{tpu_custom_call.1} parent=11 // pred_fallthru
          _
        // Predicated region
        $region25: #{tpu_custom_call.1} parent=11 // pred_check
          %p211 = pneg %p129
        $region26: #{tpu_custom_call.1} parent=11 // pred_check_branch
          %213 = sbr.rel (%p211) target = $region28
        $region27: #{tpu_custom_call.1} parent=11 // pred_region
          _
        $region28: #{tpu_custom_call.1} parent=11 // pred_fallthru
          _
        // Predicated region
        $region29: #{tpu_custom_call.1} parent=11 // pred_check
          %p214 = pneg %p150
        $region30: #{tpu_custom_call.1} parent=11 // pred_check_branch
          %216 = sbr.rel (%p214) target = $region32
        $region31: #{tpu_custom_call.1} parent=11 // pred_region
          %218 = vsyncadd [#allocation6], 0
          %s219 = sshll.u32 %s5, 4
          %s220 = int_to_ptr.hbm [resolvable:$true] %s219
          %s221 = sshll.u32 [#allocation7], 4
          %s222 = int_to_ptr.vmem [resolvable:$true] %s221
          %227 = dma.hbm_to_vmem [thread:$0]  %s220, 256, %s222, [#allocation6], 64, 64, 4
        $region32: #{tpu_custom_call.1} parent=11 // pred_fallthru
          _
      $region12: #{tpu_custom_call.1} parent=5 // pred_fallthru
        _
      %p228 = scmp.lt.s32.totalorder %s19, 2
      // Predicated region
      $region33: #{tpu_custom_call.1} parent=5 // pred_check
        %p229 = pneg %p228
      $region34: #{tpu_custom_call.1} parent=5 // pred_check_branch
        %231 = sbr.rel (%p229) target = $region36
      $region35: #{tpu_custom_call.1} parent=5 // pred_region
        // Predicated region
        $region37: #{tpu_custom_call.1} parent=35 // pred_check
          %p232 = pneg %p39
        $region38: #{tpu_custom_call.1} parent=35 // pred_check_branch
          %234 = sbr.rel (%p232) target = $region40
        $region39: #{tpu_custom_call.1} parent=35 // pred_region
          %s235 = sand.u32 %s29, 1
          %s236 = scalar_lea.sflag [#allocation3], %s235
          %s237 = sand.u32 %s29, 1
          %s238 = smul.addr %s237, 8
          %s239 = scalar_lea.vmem [#allocation2], %s238
          %241 = vsyncadd %s236, 0
          %s242 = smul.addr %s19, 8
          %s243 = scalar_lea.hbm %s0, %s242
          %s245 = sshll.u32 %s243, 4
          %s246 = int_to_ptr.hbm [resolvable:$true] %s245
          %s247 = sshll.u32 %s239, 4
          %s248 = int_to_ptr.vmem [resolvable:$true] %s247
          %250 = dma.hbm_to_vmem [thread:$0]  %s246, 128, %s248, %s236
        $region40: #{tpu_custom_call.1} parent=35 // pred_fallthru
          _
      $region36: #{tpu_custom_call.1} parent=5 // pred_fallthru
        _
      %p251 = scmp.le.s32.totalorder 1, %s19
      %p252 = scmp.lt.s32.totalorder %s19, 3
      %p253 = pnand %p251, %p252
      %p254 = pneg %p253
      // Predicated region
      $region41: #{tpu_custom_call.1} parent=5 // pred_check
        _
      $region42: #{tpu_custom_call.1} parent=5 // pred_check_branch
        %256 = sbr.rel (%p253) target = $region44
      $region43: #{tpu_custom_call.1} parent=5 // pred_region
        %s257 = ssub.s32 %s19, 1
        %s258 = sand.u32 %s32, 1
        %s259 = scalar_lea.sflag [#allocation3], %s258
        %s260 = sand.u32 %s32, 1
        %s261 = smul.addr %s260, 8
        %s262 = scalar_lea.vmem [#allocation2], %s261
        // Predicated region
        $region45: #{tpu_custom_call.1} parent=43 // pred_check
          %p263 = pneg %p45
        $region46: #{tpu_custom_call.1} parent=43 // pred_check_branch
          %265 = sbr.rel (%p263) target = $region48
        $region47: #{tpu_custom_call.1} parent=43 // pred_region
          %267 = dma.done %s259, 128
        $region48: #{tpu_custom_call.1} parent=43 // pred_fallthru
          _
        // Predicated region
        $region49: #{tpu_custom_call.1} parent=43 // pred_check
          %p268 = pneg %p66
        $region50: #{tpu_custom_call.1} parent=43 // pred_check_branch
          %270 = sbr.rel (%p268) target = $region52
        $region51: #{tpu_custom_call.1} parent=43 // pred_region
          %272 = dma.done [#allocation6], 512
        $region52: #{tpu_custom_call.1} parent=43 // pred_fallthru
          _
        // Predicated region
        $region53: #{tpu_custom_call.1} parent=43 // pred_check
          %p273 = pneg %p150
        $region54: #{tpu_custom_call.1} parent=43 // pred_check_branch
          %275 = sbr.rel (%p273) target = $region56
        $region55: #{tpu_custom_call.1} parent=43 // pred_region
          %277 = dma.done [#allocation6], 256
        $region56: #{tpu_custom_call.1} parent=43 // pred_fallthru
          _
        %s278 = sand.u32 %s32, 1
        %s279 = scalar_lea.sflag [#allocation3], %s278
        %s280 = sand.u32 %s32, 1
        %s281 = smul.addr %s280, 8
        %s282 = scalar_lea.vmem [#allocation2], %s281
        %p283 = pneg %p45
        %p284 = pneg %p42
        %p285 = pneg %p66
        %p286 = pneg %p63
        %p287 = pneg %p87
        %p288 = pneg %p84
        %p289 = pneg %p108
        %p290 = pneg %p105
        %p291 = pneg %p129
        %p292 = pneg %p126
        %p293 = pneg %p150
        %p294 = pneg %p147
        %p295 = pneg %p176
        %p296 = pneg %p173
        %s297 = sand.u32 %s163, 1
        %s298 = scalar_lea.sflag [#allocation4], %s297
        %s299 = sand.u32 %s163, 1
        %s300 = smul.addr %s299, 4
        %s301 = scalar_lea.vmem [#allocation8], %s300
        %v303 = vld [vmem:[%s262] sm:$0xff]
        %v304 = vld [vmem:[#allocation5] sm:$0xff]
        %v305 = vld [vmem:[#allocation5 + $0x8] sm:$0xff]
        %v306 = vld [vmem:[#allocation5 + $0x10] sm:$0xff]
        %v307 = vld [vmem:[#allocation5 + $0x18] sm:$0xff]
        %v308 = vld [vmem:[%s2] sm:$0x1]
        %v309 = vld [vmem:[%s3] sm:$0x1]
        %v310 = vld [vmem:[%s4] sm:$0x1]
        %v312 = vperm.slane %v308, 0
        %vm314 = vcmask 261120
        %v316 = vsel %vm314, %v303, 0
        %318 = vmatpush.msra.mxu0 0.0
        %319 = vmatpush.msra.mxu0 0.0
        %320 = vmatpush.msra.mxu0 0.0
        %321 = vmatpush.msra.mxu0 0.0
        %322 = vmatpush.msra.mxu0 0.0
        %323 = vmatpush.msra.mxu0 0.0
        %324 = vmatpush.msra.mxu0 0.0
        %325 = vmatpush.msra.mxu0 0.0
        %326 = vmatpush.msra.mxu0 0.0
        %327 = vmatpush.msra.mxu0 0.0
        %328 = vmatpush.msra.mxu0 0.0
        %329 = vmatpush.msra.mxu0 0.0
        %330 = vmatpush.msra.mxu0 %v307
        %331 = vmatpush.msra.mxu0 %v306
        %332 = vmatpush.msra.mxu0 %v305
        %333 = vmatpush.msra.mxu0 %v304
        %334 = vmatmul.f32.gmra.mxu0 %v316
        %v335 = vpop.f32.mrf.mxu0
        %v336 = vadd.f32 %v312, %v335
        %337 = vdwg.mxu0
        %v338 = vmul.f32 %v336, 0.5
        %v339 = vmul.f32 %v336, 0.70710677
        %v340 = vmul.f32 %v339, %v339
        %v341 = vmin.f32 16.0, %v340
        %v342 = vmul.f32 %v341, 2.1237322e-06
        %v343 = vadd.f32 %v342, 0.00028619796
        %v344 = vmul.f32 %v341, %v343
        %v345 = vadd.f32 %v344, 0.0036580483
        %v346 = vmul.f32 %v341, %v345
        %v347 = vadd.f32 %v346, 0.05243302
        %v348 = vmul.f32 %v341, %v347
        %v349 = vadd.f32 %v348, 0.18741608
        %v350 = vmul.f32 %v341, %v349
        %v351 = vadd.f32 %v350, 1.1283791
        %v352 = vmul.f32 %v339, %v351
        %v353 = vmul.f32 %v341, 3.8918573e-05
        %v354 = vadd.f32 %v353, 0.001143296
        %v355 = vmul.f32 %v341, %v354
        %v356 = vadd.f32 %v355, 0.014752088
        %v357 = vmul.f32 %v341, %v356
        %v358 = vadd.f32 %v357, 0.112945676
        %v359 = vmul.f32 %v341, %v358
        %v360 = vadd.f32 %v359, 0.4994258
        %v361 = vmul.f32 %v341, %v360
        %v362 = vadd.f32 %v361, 1.0
        %v363 = vrcp.pop %v362
        %v364 = vmul.f32 %v362, %v363
        %v365 = vsub.f32 1.0, %v364
        %v366 = vmul.f32 %v363, %v365
        %v367 = vadd.f32 %v363, %v366
        %vm368 = vweird.f32 %v362
        %vm369 = vweird.f32 %v363
        %vm370 = vmor %vm368, %vm369
        %v371 = vsel %vm370, %v363, %v367
        %v372 = vand.u32 2147483647, %v362
        %vm373 = vcmp.eq.f32.partialorder %v372, 8.507059e+37
        %v374 = vand.u32 %v362, 2147483648
        %v375 = vor.u32 1.1754944e-38, %v374
        %v376 = vsel %vm373, %v375, %v371
        %v377 = vmul.f32 %v352, %v376
        %v378 = vmin.f32 %v377, 1.0
        %v379 = vmax.f32 %v378, -1.0
        %v380 = vadd.f32 %v379, 1.0
        %v381 = vmul.f32 %v338, %v380
        %v382 = vsel %vm314, %v381, 0.0
        %383 = vadd.xlane.f32.xlu0 %v382
        %v384 = vpop.xlane.xlu0 %383
        %v385 = vrcp.pop 32.0
        %v386 = vmul.f32 32.0, %v385
        %v387 = vsub.f32 1.0, %v386
        %v388 = vmul.f32 %v385, %v387
        %v389 = vadd.f32 %v385, %v388
        %vm390 = vweird.f32 %v385
        %v391 = vsel %vm390, %v385, %v389
        %v392 = vmul.f32 %v384, %v391
        %v393 = vsub.f32 %v381, %v392
        %v394 = vmul.f32 %v393, %v393
        %v395 = vsel %vm314, %v394, 0.0
        %396 = vadd.xlane.f32.xlu0 %v395
        %v397 = vpop.xlane.xlu0 %396
        %v398 = vmul.f32 %v397, %v391
        %v399 = vadd.f32 %v398, 1e-07
        %v400 = vrsqrt.pop %v399
        %v401 = vmul.f32 %v400, %v399
        %v402 = vmul.f32 %v401, %v400
        %v403 = vmul.f32 0.5, %v402
        %v404 = vsub.f32 1.5, %v403
        %v405 = vmul.f32 %v400, %v404
        %vm406 = vweird.f32 %v399
        %vm407 = vweird.f32 %v400
        %vm408 = vmor %vm406, %vm407
        %v409 = vsel %vm408, %v400, %v405
        %v410 = vmul.f32 %v393, %v409
        %v412 = vperm.slane %v309, 0
        %v414 = vmul.f32 %v410, %v412
        %v416 = vperm.slane %v310, 0
        %v418 = vadd.f32 %v414, %v416
        %v419 = vpack.c.bf16 %v418, %v418
        %v420 = vld [vmem:[#allocation7] sm:$0xf]
        %v421 = vld [vmem:[#allocation7 + $0x4] sm:$0xf]
        %v422 = vld [vmem:[#allocation7 + $0x8] sm:$0xf]
        %v423 = vld [vmem:[#allocation7 + $0xc] sm:$0xf]
        %v428 = vunpack.c.l.b16 %v420
        %v429 = vunpack.c.l.b16 %v421
        %v430 = vunpack.c.l.b16 %v422
        %v431 = vunpack.c.l.b16 %v423
        %v432 = vpack.c.b16 %v429, %v428
        %v433 = vpack.c.b16 %v431, %v430
        %v437 = vsel %vm314, %v419, 0
        %439 = vmatpush.bf16.msra.mxu0 0
        %440 = vmatpush.bf16.msra.mxu0 0
        %441 = vmatpush.bf16.msra.mxu0 0
        %442 = vmatpush.bf16.msra.mxu0 0
        %443 = vmatpush.bf16.msra.mxu0 0
        %444 = vmatpush.bf16.msra.mxu0 0
        %445 = vmatpush.bf16.msra.mxu0 %v433
        %446 = vmatpush.bf16.msra.mxu0 %v432
        %447 = vmatmul.bf16.gmra.mxu0 %v437
        %v448 = vpop.f32.mrf.mxu0
        %v449 = vadd.f32 0.0, %v448
        %v450 = vpop.f32.mrf.mxu0
        %451 = vdwg.mxu0
        %v452 = vpack.c.bf16 %v449, %v449
        %453 = vst [vmem:[%s301] sm:$0xf] %v452
        %s454 = sand.u32 %s163, 1
        %s455 = scalar_lea.sflag [#allocation4], %s454
        %s456 = sand.u32 %s163, 1
        %s457 = smul.addr %s456, 4
        %s458 = scalar_lea.vmem [#allocation8], %s457
        // Predicated region
        $region57: #{tpu_custom_call.1} parent=43 // pred_check
          %p459 = pneg %p173
        $region58: #{tpu_custom_call.1} parent=43 // pred_check_branch
          %461 = sbr.rel (%p459) target = $region60
        $region59: #{tpu_custom_call.1} parent=43 // pred_region
          %463 = vsyncadd %s455, 0
          %s464 = smul.addr %s24, 4
          %s465 = scalar_lea.hbm %s6, %s464
          %s467 = sshll.u32 %s458, 4
          %s468 = int_to_ptr.vmem [resolvable:$true] %s467
          %s469 = sshll.u32 %s465, 4
          %s470 = int_to_ptr.hbm [resolvable:$true] %s469
          %472 = dma.vmem_to_hbm [thread:$0]  %s468, 64, %s470, %s455
        $region60: #{tpu_custom_call.1} parent=43 // pred_fallthru
          _
      $region44: #{tpu_custom_call.1} parent=5 // pred_fallthru
        _
      %p473 = scmp.le.s32.totalorder 2, %s19
      // Predicated region
      $region61: #{tpu_custom_call.1} parent=5 // pred_check
        %p474 = pneg %p473
      $region62: #{tpu_custom_call.1} parent=5 // pred_check_branch
        %476 = sbr.rel (%p474) target = $region64
      $region63: #{tpu_custom_call.1} parent=5 // pred_region
        %s477 = ssub.s32 %s19, 2
        // Predicated region
        $region65: #{tpu_custom_call.1} parent=63 // pred_check
          %p478 = pneg %p179
        $region66: #{tpu_custom_call.1} parent=63 // pred_check_branch
          %480 = sbr.rel (%p478) target = $region68
        $region67: #{tpu_custom_call.1} parent=63 // pred_region
          %s481 = sand.u32 %s164, 1
          %s482 = scalar_lea.sflag [#allocation4], %s481
          %s483 = sand.u32 %s164, 1
          %s484 = smul.addr %s483, 4
          %s485 = scalar_lea.vmem [#allocation8], %s484
          %487 = dma.done %s482, 64
        $region68: #{tpu_custom_call.1} parent=63 // pred_fallthru
          _
      $region64: #{tpu_custom_call.1} parent=5 // pred_fallthru
        _
    $region6: #{tpu_custom_call.1} parent=1 // loop_footer
      %s23 = sadd.s32 1, %s19
    $region7: #{tpu_custom_call.1} parent=1 // loop_footer_branch
      %18 = sbr.rel target = $region3
    $region8: #{tpu_custom_call.1} parent=1 // loop_exit
      _
    %488 = vsyncpa [#allocation3], 1
    %s489 = scalar_lea.sflag [#allocation3], 1
    %490 = vsyncpa %s489, 1
    %491 = vsyncpa [#allocation6], 1
    %492 = vsyncpa [#allocation4], 1
    %s493 = scalar_lea.sflag [#allocation4], 1
    %494 = vsyncpa %s493, 1

</llo_original>
